<compile_context>
chip_gen: v7x
topology: tpu7x:2x2x1
jax: 0.10.0
libtpu: 0.0.40
codegen_flags: <defaults>
</compile_context>

<pallas_src>
import functools
import math

import jax
import jax.numpy as jnp
from jax.experimental import pallas as pl
from jax.experimental.pallas import tpu as pltpu

_LANES = 128
_SUBLANES = 8      # f32 vreg sublanes (accumulator shape)
_ROW_PACK = 32     # tile-row rounding: covers f32(8) / bf16(16) / int8,fp8(32)


def _cdiv(a, b):
    return -(-a // b)


def _round_up(x, m):
    return _cdiv(x, m) * m


def _tile_budget():
    """Per-generation (max tile rows, scoped-VMEM limit in bytes)."""
    try:
        vmem_bytes = pltpu.get_tpu_info().vmem_capacity_bytes
    except Exception:
        vmem_bytes = 64 * 1024 * 1024      # conservative fallback, safe everywhere
    if vmem_bytes >= 100 * 1024 * 1024:
        # v5e / v6e: 128 MiB physical VMEM. 8192-row f32 tiles are 4 MiB/input,
        # 32 MiB double-buffered; 100 MiB scoped limit leaves ample headroom
        # for elementwise temporaries.
        return 8192, 100 * 1024 * 1024
    # v7x: 64 MiB VMEM per TensorCore -> cap at 4096 rows (16 MiB double-buffered).
    return 4096, 48 * 1024 * 1024


def _bikld_kernel(q_mu_ref, q_lv_ref, p_mu_ref, p_lv_ref, out_ref, *,
                  tiles_per_core, tile_rows, rows, needs_mask):
    i = pl.program_id(1)               # reduction (tile) axis, innermost

    @pl.when(i == 0)
    def _init():
        out_ref[...] = jnp.zeros_like(out_ref)

    # HBM traffic stays in the native dtype; the f32 upcast is a free VPU op.
    q_mu = q_mu_ref[...].astype(jnp.float32)
    q_lv = q_lv_ref[...].astype(jnp.float32)
    p_mu = p_mu_ref[...].astype(jnp.float32)
    p_lv = p_lv_ref[...].astype(jnp.float32)

    # kld = q_var/p_var - 1 + (p_mu - q_mu)^2 / p_var + p_lv - q_lv
    #     = exp(d) - d - 1 + diff^2 * exp(-p_lv),     d = q_lv - p_lv
    # Division-free; both exps go to the EUP slot. The "-1" is hoisted out of
    # the per-element math: f = kld + 1.
    d = q_lv - p_lv
    diff = p_mu - q_mu
    f = jnp.exp(d) - d + diff * diff * jnp.exp(-p_lv)

    groups = tile_rows // _SUBLANES

    def _accumulate(vals, hoisted):
        # Pure vreg-wise VPU adds into the resident (8,128) output block; the
        # single cross-lane reduce to a scalar is deferred to the wrapper.
        part = jnp.sum(vals.reshape(groups, _SUBLANES, _LANES), axis=0)
        if hoisted:
            # Re-apply the hoisted "-1" once per accumulator slot (each slot
            # absorbed `groups` elements this step); lane-padded zeros give
            # f == 1 and therefore cancel exactly against this term.
            part = part - float(groups)
        out_ref[...] += part

    if needs_mask:
        c = pl.program_id(0)
        tile_start = (c * tiles_per_core + i) * tile_rows
        valid_rows = rows - tile_start          # per-tile scalar bound

        @pl.when(valid_rows >= tile_rows)       # interior tile: mask-free path
        def _full():
            _accumulate(f, hoisted=True)

        @pl.when(valid_rows < tile_rows)        # boundary / overhang tile only
        def _partial():
            row = jax.lax.broadcasted_iota(jnp.int32, (tile_rows, _LANES), 0)
            # Mask (f - 1): real rows contribute the true kld, lane-padded
            # zeros give exp(0) - 0 - 1 == 0, out-of-range rows are zeroed.
            _accumulate(jnp.where(row < valid_rows, f - 1.0, 0.0), hoisted=False)
    else:
        _accumulate(f, hoisted=True)


def _bikld_pallas(q_mu, q_lv, p_mu, p_lv, n):
    n_lane = _round_up(n, _LANES)
    rows = n_lane // _LANES

    cap_rows, vmem_limit = _tile_budget()

    # Core-slice split: axis 0 shards the reduction across v7x's 2 TensorCores;
    # it is a cheap 2-iteration serial loop on single-TC v5e/v6e.
    nc = 2 if rows > _ROW_PACK else 1
    tiles_total = _round_up(max(_cdiv(rows, cap_rows), nc), nc)
    tile_rows = min(cap_rows, _round_up(_cdiv(rows, tiles_total), _ROW_PACK))
    tiles_per_core = tiles_total // nc
    covered_rows = tiles_total * tile_rows
    needs_mask = covered_rows != rows
    # Last block index that still overlaps real data; clamp the index_map to it
    # so tile rounding can never issue a DMA for a block fully past the array.
    last_block = _cdiv(rows, tile_rows) - 1
    needs_clamp = (tiles_total - 1) > last_block

    def _prep(a):
        flat = a.reshape(-1)                    # layout-preserving (free) reshape
        if n_lane != n:
            # Only a <=127-element lane pad; skipped in the common aligned case,
            # so no extra read+write pass over the inputs.
            flat = jnp.pad(flat, (0, n_lane - n))
        return flat.reshape(rows, _LANES)       # lane-dense layout

    args = [_prep(a) for a in (q_mu, q_lv, p_mu, p_lv)]

    if needs_clamp:
        def in_index(c, i, T=tiles_per_core, lb=last_block):
            return (jnp.minimum(c * T + i, lb), 0)
    else:
        def in_index(c, i, T=tiles_per_core):
            return (c * T + i, 0)

    in_spec = pl.BlockSpec((tile_rows, _LANES), in_index)
    # Same block index across the reduction axis -> the (8,128) partial-sum
    # block stays resident in VMEM and is accumulated into directly.
    out_spec = pl.BlockSpec((_SUBLANES, _LANES), lambda c, i: (c, 0))

    kernel = functools.partial(
        _bikld_kernel,
        tiles_per_core=tiles_per_core,
        tile_rows=tile_rows,
        rows=rows,
        needs_mask=needs_mask,
    )

    partials = pl.pallas_call(
        kernel,
        out_shape=jax.ShapeDtypeStruct((nc * _SUBLANES, _LANES), jnp.float32),
        grid_spec=pltpu.PrefetchScalarGridSpec(
            num_scalar_prefetch=0,
            grid=(nc, tiles_per_core),
            in_specs=[in_spec] * 4,
            out_specs=out_spec,
        ),
        compiler_params=pltpu.CompilerParams(
            dimension_semantics=("parallel", "arbitrary"),
            vmem_limit_bytes=vmem_limit,
        ),
    )(*args)

    out_dtype = jnp.result_type(q_mu.dtype, q_lv.dtype, p_mu.dtype, p_lv.dtype)
    # Tiny final cross-lane reduce over the (nc*8, 128) partials + /2.
    return (0.5 * jnp.sum(partials)).astype(out_dtype)


def _bikld_ref(q, p):
    q_mu, q_lv = q
    p_mu, p_lv = p
    q_var, p_var = jnp.exp(q_lv), jnp.exp(p_lv)
    kld = q_var / p_var - 1.0
    kld = kld + (p_mu - q_mu) ** 2 / p_var
    kld = kld + p_lv - q_lv
    return jnp.sum(kld) / 2.0


def bikld(q, p, *, min_pallas_elements=262144, force_pallas=False):
    """q = (q_mu, q_logvar), p = (p_mu, p_logvar); returns scalar KLD."""
    q_mu, q_lv = q
    p_mu, p_lv = p
    assert q_mu.shape == q_lv.shape == p_mu.shape == p_lv.shape

    n = math.prod(q_mu.shape)                  # static Python int
    if n == 0 or (n < min_pallas_elements and not force_pallas):
        # Small-input fast path: pallas_call fixed overhead dominates for tiny
        # latents; XLA's fused elementwise+reduce is strictly faster there.
        return _bikld_ref(q, p)
    return _bikld_pallas(q_mu, q_lv, p_mu, p_lv, n)


if __name__ == "__main__":
    def make_inputs(shape, key):
        k1, k2, k3, k4 = jax.random.split(key, 4)
        q_mu = jax.random.normal(k1, shape, dtype=jnp.float32)
        q_lv = 0.1 * jax.random.normal(k2, shape, dtype=jnp.float32)
        p_mu = jax.random.normal(k3, shape, dtype=jnp.float32)
        p_lv = 0.1 * jax.random.normal(k4, shape, dtype=jnp.float32)
        return (q_mu, q_lv), (p_mu, p_lv)

    def check(out, ref):
        assert jnp.allclose(out, ref, rtol=2e-5, atol=1e-4), (out, ref)

    root = jax.random.PRNGKey(0)
    k0, k1, k2, k3 = jax.random.split(root, 4)

    # 1) Tiny latent (batch=2, hidden=32): public API takes the XLA fast path;
    #    the same inputs are then forced through the Pallas kernel, which
    #    exercises the ragged 64-element tail + boundary-tile mask path.
    q, p = make_inputs((2, 32), k0)
    ref = _bikld_ref(q, p)
    check(jax.block_until_ready(bikld(q, p)), ref)
    check(jax.block_until_ready(bikld(q, p, force_pallas=True)), ref)

    # 2) 128-lane aligned case: no padding, no masking, both core slices.
    q, p = make_inputs((2, 4, 16, 128), k1)
    check(jax.block_until_ready(bikld(q, p, force_pallas=True)), _bikld_ref(q, p))

    # 3) Ragged multi-row case: lane pad + boundary-tile mask, two core slices.
    q, p = make_inputs((2, 5, 301, 41), k2)
    check(jax.block_until_ready(bikld(q, p, force_pallas=True)), _bikld_ref(q, p))

    # 4) Larger aligned case: multiple tiles per core slice (big-tile path).
    q, p = make_inputs((4, 8, 256, 270), k3)
    check(jax.block_until_ready(bikld(q, p, force_pallas=True)), _bikld_ref(q, p))

    print("KERNEL_OK")
</pallas_src>

<mosaic_0001>
module attributes {stable_mosaic.version = 11 : i64} {
  func.func @_bikld_kernel(%arg0: i32, %arg1: i32, %arg2: memref<32x128xf32, #tpu.memory_space<vmem>>, %arg3: memref<32x128xf32, #tpu.memory_space<vmem>>, %arg4: memref<32x128xf32, #tpu.memory_space<vmem>>, %arg5: memref<32x128xf32, #tpu.memory_space<vmem>>, %arg6: memref<8x128xf32, #tpu.memory_space<vmem>>) attributes {dimension_semantics = [#tpu.dimension_semantics<parallel>, #tpu.dimension_semantics<arbitrary>], iteration_bounds = array<i64: 1, 1>, scalar_prefetch = 0 : i64, scratch_operands = 0 : i64, tpu.core_type = #tpu.core_type<tc>, window_params = [{transform_indices = @transform_0, window_bounds = array<i64: 32, 128>}, {transform_indices = @transform_1, window_bounds = array<i64: 32, 128>}, {transform_indices = @transform_2, window_bounds = array<i64: 32, 128>}, {transform_indices = @transform_3, window_bounds = array<i64: 32, 128>}, {transform_indices = @transform_4, window_bounds = array<i64: 8, 128>}]} {
    %c0_i32 = arith.constant 0 : i32
    %0 = arith.cmpi eq, %arg1, %c0_i32 : i32
    %1 = arith.extui %0 : i1 to i32
    %c0_i32_0 = arith.constant 0 : i32
    %2 = arith.cmpi ne, %1, %c0_i32_0 : i32
    scf.if %2 {
      %cst_13 = arith.constant 0.000000e+00 : f32
      %27 = vector.broadcast %cst_13 : f32 to vector<8x128xf32>
      %c0_14 = arith.constant 0 : index
      %c0_15 = arith.constant 0 : index
      %28 = vector.load %arg6[%c0_14, %c0_15] : memref<8x128xf32, #tpu.memory_space<vmem>>, vector<8x128xf32>
      tpu.vector_store %arg6[%c0_14, %c0_15], %27 {strides = array<i32>} : memref<8x128xf32, #tpu.memory_space<vmem>>, vector<8x128xf32>,
    } else {
    }
    %c0 = arith.constant 0 : index
    %c0_1 = arith.constant 0 : index
    %3 = vector.load %arg2[%c0, %c0_1] : memref<32x128xf32, #tpu.memory_space<vmem>>, vector<32x128xf32>
    %c0_2 = arith.constant 0 : index
    %c0_3 = arith.constant 0 : index
    %4 = vector.load %arg3[%c0_2, %c0_3] : memref<32x128xf32, #tpu.memory_space<vmem>>, vector<32x128xf32>
    %c0_4 = arith.constant 0 : index
    %c0_5 = arith.constant 0 : index
    %5 = vector.load %arg4[%c0_4, %c0_5] : memref<32x128xf32, #tpu.memory_space<vmem>>, vector<32x128xf32>
    %c0_6 = arith.constant 0 : index
    %c0_7 = arith.constant 0 : index
    %6 = vector.load %arg5[%c0_6, %c0_7] : memref<32x128xf32, #tpu.memory_space<vmem>>, vector<32x128xf32>
    %7 = arith.subf %4, %6 : vector<32x128xf32>
    %8 = arith.subf %5, %3 : vector<32x128xf32>
    %9 = math.exp %7 : vector<32x128xf32>
    %10 = arith.subf %9, %7 : vector<32x128xf32>
    %11 = arith.mulf %8, %8 : vector<32x128xf32>
    %cst = arith.constant 0.000000e+00 : f32
    %12 = vector.broadcast %cst : f32 to vector<32x128xf32>
    %13 = arith.subf %12, %6 : vector<32x128xf32>
    %14 = math.exp %13 : vector<32x128xf32>
    %15 = arith.mulf %11, %14 : vector<32x128xf32>
    %16 = arith.addf %10, %15 : vector<32x128xf32>
    %c1_i32 = arith.constant 1 : i32
    %17 = arith.muli %arg0, %c1_i32 : i32
    %18 = arith.addi %17, %arg1 : i32
    %c32_i32 = arith.constant 32 : i32
    %19 = arith.muli %18, %c32_i32 : i32
    %c1_i32_8 = arith.constant 1 : i32
    %20 = arith.subi %c1_i32_8, %19 : i32
    %c32_i32_9 = arith.constant 32 : i32
    %21 = arith.cmpi sge, %20, %c32_i32_9 : i32
    %22 = arith.extui %21 : i1 to i32
    %c0_i32_10 = arith.constant 0 : i32
    %23 = arith.cmpi ne, %22, %c0_i32_10 : i32
    scf.if %23 {
      %27 = vector.shape_cast %16 : vector<32x128xf32> to vector<4x8x128xf32>
      %cst_13 = arith.constant dense<0.000000e+00> : vector<8x128xf32>
      %28 = vector.multi_reduction <add>, %27, %cst_13 [0] : vector<4x8x128xf32> to vector<8x128xf32>
      %cst_14 = arith.constant 4.000000e+00 : f32
      %29 = vector.broadcast %cst_14 : f32 to vector<8x128xf32>
      %30 = arith.subf %28, %29 : vector<8x128xf32>
      %c0_15 = arith.constant 0 : index
      %c0_16 = arith.constant 0 : index
      %31 = vector.load %arg6[%c0_15, %c0_16] : memref<8x128xf32, #tpu.memory_space<vmem>>, vector<8x128xf32>
      %32 = arith.addf %31, %30 : vector<8x128xf32>
      %c0_17 = arith.constant 0 : index
      %c0_18 = arith.constant 0 : index
      %33 = vector.load %arg6[%c0_17, %c0_18] : memref<8x128xf32, #tpu.memory_space<vmem>>, vector<8x128xf32>
      tpu.vector_store %arg6[%c0_17, %c0_18], %32 {strides = array<i32>} : memref<8x128xf32, #tpu.memory_space<vmem>>, vector<8x128xf32>,
    } else {
    }
    %c32_i32_11 = arith.constant 32 : i32
    %24 = arith.cmpi slt, %20, %c32_i32_11 : i32
    %25 = arith.extui %24 : i1 to i32
    %c0_i32_12 = arith.constant 0 : i32
    %26 = arith.cmpi ne, %25, %c0_i32_12 : i32
    scf.if %26 {
      %27 = tpu.iota {dimensions = array<i32: 0>} : vector<32x128xi32>
      %28 = vector.broadcast %20 : i32 to vector<32x128xi32>
      %29 = arith.cmpi slt, %27, %28 : vector<32x128xi32>
      %cst_13 = arith.constant 1.000000e+00 : f32
      %30 = vector.broadcast %cst_13 : f32 to vector<32x128xf32>
      %31 = arith.subf %16, %30 : vector<32x128xf32>
      %cst_14 = arith.constant 0.000000e+00 : f32
      %32 = vector.broadcast %cst_14 : f32 to vector<32x128xf32>
      %33 = arith.select %29, %31, %32 : vector<32x128xi1>, vector<32x128xf32>
      %34 = vector.shape_cast %33 : vector<32x128xf32> to vector<4x8x128xf32>
      %cst_15 = arith.constant dense<0.000000e+00> : vector<8x128xf32>
      %35 = vector.multi_reduction <add>, %34, %cst_15 [0] : vector<4x8x128xf32> to vector<8x128xf32>
      %c0_16 = arith.constant 0 : index
      %c0_17 = arith.constant 0 : index
      %36 = vector.load %arg6[%c0_16, %c0_17] : memref<8x128xf32, #tpu.memory_space<vmem>>, vector<8x128xf32>
      %37 = arith.addf %36, %35 : vector<8x128xf32>
      %c0_18 = arith.constant 0 : index
      %c0_19 = arith.constant 0 : index
      %38 = vector.load %arg6[%c0_18, %c0_19] : memref<8x128xf32, #tpu.memory_space<vmem>>, vector<8x128xf32>
      tpu.vector_store %arg6[%c0_18, %c0_19], %37 {strides = array<i32>} : memref<8x128xf32, #tpu.memory_space<vmem>>, vector<8x128xf32>,
    } else {
    }
    return
  }
  func.func @transform_0(%arg0: i32, %arg1: i32) -> (i32, i32) {
    %c1_i32 = arith.constant 1 : i32
    %0 = arith.muli %arg0, %c1_i32 : i32
    %1 = arith.addi %0, %arg1 : i32
    %c0_i32 = arith.constant 0 : i32
    %c0_i32_0 = arith.constant 0 : i32
    return %1, %c0_i32 : i32, i32
  }
  func.func @transform_1(%arg0: i32, %arg1: i32) -> (i32, i32) {
    %c1_i32 = arith.constant 1 : i32
    %0 = arith.muli %arg0, %c1_i32 : i32
    %1 = arith.addi %0, %arg1 : i32
    %c0_i32 = arith.constant 0 : i32
    %c0_i32_0 = arith.constant 0 : i32
    return %1, %c0_i32 : i32, i32
  }
  func.func @transform_2(%arg0: i32, %arg1: i32) -> (i32, i32) {
    %c1_i32 = arith.constant 1 : i32
    %0 = arith.muli %arg0, %c1_i32 : i32
    %1 = arith.addi %0, %arg1 : i32
    %c0_i32 = arith.constant 0 : i32
    %c0_i32_0 = arith.constant 0 : i32
    return %1, %c0_i32 : i32, i32
  }
  func.func @transform_3(%arg0: i32, %arg1: i32) -> (i32, i32) {
    %c1_i32 = arith.constant 1 : i32
    %0 = arith.muli %arg0, %c1_i32 : i32
    %1 = arith.addi %0, %arg1 : i32
    %c0_i32 = arith.constant 0 : i32
    %c0_i32_0 = arith.constant 0 : i32
    return %1, %c0_i32 : i32, i32
  }
  func.func @transform_4(%arg0: i32, %arg1: i32) -> (i32, i32) {
    %c0_i32 = arith.constant 0 : i32
    %c0_i32_0 = arith.constant 0 : i32
    return %arg0, %c0_i32 : i32, i32
  }
}

</mosaic_0001>

<llo_original>
// kernel: tpu_custom_call.1
$region0: #{tpu_custom_call.1}
  #allocation0 [shape = 'u32[]', space=smem, size = 0x4, offset = 0x4, fixed_abs, tag = 'smem constant byte address 0x4 - core index']
  #allocation1 [shape = 'u32[144,128]{1,0:T(1,128)}', space=vmem, size = 0x12000, scoped, tag = 'internal scratch']
  %s0 = inlined_call_operand.hbm [shape: f32[1,128], index: 0, kind: input, shape index: {}]
  %s1 = inlined_call_operand.vmem [shape: f32[1,128], index: 1, kind: input, shape index: {}]
  %s2 = inlined_call_operand.vmem [shape: f32[1,128], index: 2, kind: input, shape index: {}]
  %s3 = inlined_call_operand.vmem [shape: f32[1,128], index: 3, kind: input, shape index: {}]
  %s4 = inlined_call_operand.hbm [shape: f32[8,128], index: 4, kind: output, shape index: {}]
  %s5 = sld [smem:[#allocation0]]
  $region42: #{tpu_custom_call.1} parent=0
    _
  %s7 = ssub.s32 1, %s5
  %s8 = scalar_select 0, %s7, %s5
  $region1: #{tpu_custom_call.1} parent=0
    #allocation2 [shape = 'u8[16384]{0}', space=vmem, size = 0x4000, scoped, tag = 'input window, operand 0, single buffered']
    #allocation3 [shape = 's32[1]{0}', space=sflag, size = 0x4, scoped, tag = 'scoped memory for tpu_custom_call.1']
    #allocation4 [shape = 's32[1]{0}', space=sflag, size = 0x4, scoped, tag = 'scoped memory for tpu_custom_call.1']
    #allocation5 [shape = 'u8[4096]{0}', space=vmem, size = 0x1000, scoped, tag = 'output window, operand 0, single buffered']
    %9 = vsyncpa [#allocation3], 0
    %10 = vsyncpa [#allocation4], 0
    // Predicated region
    $region2: #{tpu_custom_call.1} parent=1 // pred_check
      _
    $region3: #{tpu_custom_call.1} parent=1 // pred_check_branch
      %12 = sbr.rel (0) target = $region5
    $region4: #{tpu_custom_call.1} parent=1 // pred_region
      %s13 = sadd.s32 0, 0
      %s14 = smul.u32 32, %s13
      %s15 = ssub.s32 1, %s14
      %s16 = smul.u32 16, %s15
      %s18 = ssub.s32 512, %s16
      %19 = vsyncadd [#allocation3], %s18
      %p20 = scmp.ne.s32.totalorder 0, %s16
      %s21 = smul.addr %s14, 16
      %s22 = scalar_lea.hbm %s0, %s21
      %s23 = sshll.u32 [#allocation2], 4
      %s24 = int_to_ptr.vmem [resolvable:$true] %s23
      %s25 = sshll.u32 %s15, 4
      %29 = dma.hbm_to_vmem [thread:$0]  (%p20), %s22, %s25, %s24, [#allocation3], 16, 16, 1
    $region5: #{tpu_custom_call.1} parent=1 // pred_fallthru
      _
    // Predicated region
    $region6: #{tpu_custom_call.1} parent=1 // pred_check
      _
    $region7: #{tpu_custom_call.1} parent=1 // pred_check_branch
      %31 = sbr.rel (0) target = $region9
    $region8: #{tpu_custom_call.1} parent=1 // pred_region
      %s32 = sadd.s32 0, 0
      %s33 = smul.u32 32, %s32
      %s34 = ssub.s32 1, %s33
      %s35 = smul.u32 16, %s34
      %p36 = scmp.lt.s32.totalorder %s33, 0
      %s37 = scalar_select %p36, %s33, 0
      %s38 = scalar_lea.vmem %s1, %s37
      %s39 = sadd.s32 0, 0
      %s40 = smul.u32 32, %s39
      %s41 = ssub.s32 1, %s40
      %s42 = smul.u32 16, %s41
    $region9: #{tpu_custom_call.1} parent=1 // pred_fallthru
      _
    // Predicated region
    $region10: #{tpu_custom_call.1} parent=1 // pred_check
      _
    $region11: #{tpu_custom_call.1} parent=1 // pred_check_branch
      %44 = sbr.rel (0) target = $region13
    $region12: #{tpu_custom_call.1} parent=1 // pred_region
      %s45 = sadd.s32 0, 0
      %s46 = smul.u32 32, %s45
      %s47 = ssub.s32 1, %s46
      %s48 = smul.u32 16, %s47
      %p49 = scmp.lt.s32.totalorder %s46, 0
      %s50 = scalar_select %p49, %s46, 0
      %s51 = scalar_lea.vmem %s2, %s50
      %s52 = sadd.s32 0, 0
      %s53 = smul.u32 32, %s52
      %s54 = ssub.s32 1, %s53
      %s55 = smul.u32 16, %s54
    $region13: #{tpu_custom_call.1} parent=1 // pred_fallthru
      _
    // Predicated region
    $region14: #{tpu_custom_call.1} parent=1 // pred_check
      _
    $region15: #{tpu_custom_call.1} parent=1 // pred_check_branch
      %57 = sbr.rel (0) target = $region17
    $region16: #{tpu_custom_call.1} parent=1 // pred_region
      %s58 = sadd.s32 0, 0
      %s59 = smul.u32 32, %s58
      %s60 = ssub.s32 1, %s59
      %s61 = smul.u32 16, %s60
      %p62 = scmp.lt.s32.totalorder %s59, 0
      %s63 = scalar_select %p62, %s59, 0
      %s64 = scalar_lea.vmem %s3, %s63
      %s65 = sadd.s32 0, 0
      %s66 = smul.u32 32, %s65
      %s67 = ssub.s32 1, %s66
      %s68 = smul.u32 16, %s67
    $region17: #{tpu_custom_call.1} parent=1 // pred_fallthru
      _
    // Predicated region
    $region18: #{tpu_custom_call.1} parent=1 // pred_check
      _
    $region19: #{tpu_custom_call.1} parent=1 // pred_check_branch
      %70 = sbr.rel (0) target = $region21
    $region20: #{tpu_custom_call.1} parent=1 // pred_region
      %71 = dma.done [#allocation3], 512
    $region21: #{tpu_custom_call.1} parent=1 // pred_fallthru
      _
    %s72 = sadd.s32 0, 0
    %s73 = smul.u32 32, %s72
    %s74 = ssub.s32 1, %s73
    %s75 = smul.u32 16, %s74
    %p76 = scmp.lt.s32.totalorder %s73, 0
    %s77 = scalar_select %p76, %s73, 0
    %s78 = scalar_lea.vmem %s1, %s77
    %s79 = sadd.s32 0, 0
    %s80 = smul.u32 32, %s79
    %s81 = ssub.s32 1, %s80
    %s82 = smul.u32 16, %s81
    %p83 = scmp.lt.s32.totalorder %s80, 0
    %s84 = scalar_select %p83, %s80, 0
    %s85 = scalar_lea.vmem %s2, %s84
    %s86 = sadd.s32 0, 0
    %s87 = smul.u32 32, %s86
    %s88 = ssub.s32 1, %s87
    %s89 = smul.u32 16, %s88
    %p90 = scmp.lt.s32.totalorder %s87, 0
    %s91 = scalar_select %p90, %s87, 0
    %s92 = scalar_lea.vmem %s3, %s91
    %s93 = sadd.s32 0, 0
    %s94 = smul.u32 32, %s93
    %s95 = ssub.s32 1, %s94
    %s96 = smul.u32 16, %s95
    %s97 = sadd.s32 0, 0
    %s98 = smul.u32 32, %s97
    %s99 = ssub.s32 1, %s98
    %s100 = smul.u32 16, %s99
    %p101 = scmp.lt.s32.totalorder %s98, 0
    %s102 = scalar_select %p101, %s98, 0
    %s103 = scalar_lea.vmem %s1, %s102
    %s104 = sadd.s32 0, 0
    %s105 = smul.u32 32, %s104
    %s106 = ssub.s32 1, %s105
    %s107 = smul.u32 16, %s106
    %s108 = sadd.s32 0, 0
    %s109 = smul.u32 32, %s108
    %s110 = ssub.s32 1, %s109
    %s111 = smul.u32 16, %s110
    %p112 = scmp.lt.s32.totalorder %s109, 0
    %s113 = scalar_select %p112, %s109, 0
    %s114 = scalar_lea.vmem %s2, %s113
    %s115 = sadd.s32 0, 0
    %s116 = smul.u32 32, %s115
    %s117 = ssub.s32 1, %s116
    %s118 = smul.u32 16, %s117
    %s119 = sadd.s32 0, 0
    %s120 = smul.u32 32, %s119
    %s121 = ssub.s32 1, %s120
    %s122 = smul.u32 16, %s121
    %p123 = scmp.lt.s32.totalorder %s120, 0
    %s124 = scalar_select %p123, %s120, 0
    %s125 = scalar_lea.vmem %s3, %s124
    %s126 = sadd.s32 0, 0
    %s127 = smul.u32 32, %s126
    %s128 = ssub.s32 1, %s127
    %s129 = smul.u32 16, %s128
    %p130 = scmp.eq.s32.totalorder 0, 0
    // Predicated region
    $region22: #{tpu_custom_call.1} parent=1 // pred_check
      %p131 = pneg %p130
    $region23: #{tpu_custom_call.1} parent=1 // pred_check_branch
      %133 = sbr.rel (%p131) target = $region25
    $region24: #{tpu_custom_call.1} parent=1 // pred_region
      %134 = vst [vmem:[#allocation5] sm:$0xff] 0.0
    $region25: #{tpu_custom_call.1} parent=1 // pred_fallthru
      _
    %v135 = vld [vmem:[#allocation2] sm:$0xff]
    %v136 = vld [vmem:[#allocation2 + $0x8] sm:$0xff]
    %v137 = vld [vmem:[#allocation2 + $0x10] sm:$0xff]
    %v138 = vld [vmem:[#allocation2 + $0x18] sm:$0xff]
    %v139 = vld [vmem:[%s103] sm:$0xff]
    %v140 = vld [vmem:[%s103 + $0x8] sm:$0xff]
    %v141 = vld [vmem:[%s103 + $0x10] sm:$0xff]
    %v142 = vld [vmem:[%s103 + $0x18] sm:$0xff]
    %v143 = vld [vmem:[%s114] sm:$0xff]
    %v144 = vld [vmem:[%s114 + $0x8] sm:$0xff]
    %v145 = vld [vmem:[%s114 + $0x10] sm:$0xff]
    %v146 = vld [vmem:[%s114 + $0x18] sm:$0xff]
    %v147 = vld [vmem:[%s125] sm:$0xff]
    %v148 = vld [vmem:[%s125 + $0x8] sm:$0xff]
    %v149 = vld [vmem:[%s125 + $0x10] sm:$0xff]
    %v150 = vld [vmem:[%s125 + $0x18] sm:$0xff]
    %v151 = vsub.f32 %v139, %v147
    %v152 = vsub.f32 %v140, %v148
    %v153 = vsub.f32 %v141, %v149
    %v154 = vsub.f32 %v142, %v150
    %v155 = vsub.f32 %v143, %v135
    %v156 = vsub.f32 %v144, %v136
    %v157 = vsub.f32 %v145, %v137
    %v158 = vsub.f32 %v146, %v138
    %v159 = vmul.f32 %v151, 1.442695
    %v160 = vpow.pop %v159
    %v161 = vmul.f32 %v152, 1.442695
    %v162 = vpow.pop %v161
    %v163 = vmul.f32 %v153, 1.442695
    %v164 = vpow.pop %v163
    %v165 = vmul.f32 %v154, 1.442695
    %v166 = vpow.pop %v165
    %v167 = vsub.f32 %v160, %v151
    %v168 = vsub.f32 %v162, %v152
    %v169 = vsub.f32 %v164, %v153
    %v170 = vsub.f32 %v166, %v154
    %v171 = vmul.f32 %v155, %v155
    %v172 = vmul.f32 %v156, %v156
    %v173 = vmul.f32 %v157, %v157
    %v174 = vmul.f32 %v158, %v158
    %v175 = vsub.f32 0.0, %v147
    %v176 = vsub.f32 0.0, %v148
    %v177 = vsub.f32 0.0, %v149
    %v178 = vsub.f32 0.0, %v150
    %v179 = vmul.f32 %v175, 1.442695
    %v180 = vpow.pop %v179
    %v181 = vmul.f32 %v176, 1.442695
    %v182 = vpow.pop %v181
    %v183 = vmul.f32 %v177, 1.442695
    %v184 = vpow.pop %v183
    %v185 = vmul.f32 %v178, 1.442695
    %v186 = vpow.pop %v185
    %v187 = vmul.f32 %v171, %v180
    %v188 = vmul.f32 %v172, %v182
    %v189 = vmul.f32 %v173, %v184
    %v190 = vmul.f32 %v174, %v186
    %v191 = vadd.f32 %v167, %v187
    %v192 = vadd.f32 %v168, %v188
    %v193 = vadd.f32 %v169, %v189
    %v194 = vadd.f32 %v170, %v190
    %s195 = sadd.s32 0, 0
    %s196 = smul.u32 %s195, 32
    %s197 = ssub.s32 1, %s196
    %p198 = scmp.ge.s32.totalorder %s197, 32
    // Predicated region
    $region26: #{tpu_custom_call.1} parent=1 // pred_check
      %p199 = pneg %p198
    $region27: #{tpu_custom_call.1} parent=1 // pred_check_branch
      %201 = sbr.rel (%p199) target = $region29
    $region28: #{tpu_custom_call.1} parent=1 // pred_region
      %v202 = vadd.f32 %v191, %v192
      %v203 = vadd.f32 %v202, %v193
      %v204 = vadd.f32 %v203, %v194
      %v205 = vsub.f32 %v204, 4.0
      %v206 = vld [vmem:[#allocation5] sm:$0xff]
      %v207 = vadd.f32 %v206, %v205
      %208 = vst [vmem:[#allocation5] sm:$0xff] %v207
    $region29: #{tpu_custom_call.1} parent=1 // pred_fallthru
      _
    %p209 = scmp.lt.s32.totalorder %s197, 32
    // Predicated region
    $region30: #{tpu_custom_call.1} parent=1 // pred_check
      %p210 = pneg %p209
    $region31: #{tpu_custom_call.1} parent=1 // pred_check_branch
      %212 = sbr.rel (%p210) target = $region33
    $region32: #{tpu_custom_call.1} parent=1 // pred_region
      %v213 = vlaneseq
      %v214 = vshrl.u32 %v213, 7
      %v215 = vadd.s32 %v214, 8
      %v216 = vadd.s32 %v214, 16
      %v217 = vadd.s32 %v214, 24
      %v218 = vstv %s197
      %vm219 = vcmp.lt.s32.totalorder %v214, %v218
      %vm220 = vcmp.lt.s32.totalorder %v215, %v218
      %vm221 = vcmp.lt.s32.totalorder %v216, %v218
      %vm222 = vcmp.lt.s32.totalorder %v217, %v218
      %v223 = vsub.f32 %v191, 1.0
      %v224 = vsub.f32 %v192, 1.0
      %v225 = vsub.f32 %v193, 1.0
      %v226 = vsub.f32 %v194, 1.0
      %v227 = vsel %vm219, %v223, 0.0
      %v228 = vsel %vm220, %v224, 0.0
      %v229 = vsel %vm221, %v225, 0.0
      %v230 = vsel %vm222, %v226, 0.0
      %v231 = vadd.f32 %v227, %v228
      %v232 = vadd.f32 %v231, %v229
      %v233 = vadd.f32 %v232, %v230
      %v234 = vld [vmem:[#allocation5] sm:$0xff]
      %v235 = vadd.f32 %v234, %v233
      %236 = vst [vmem:[#allocation5] sm:$0xff] %v235
    $region33: #{tpu_custom_call.1} parent=1 // pred_fallthru
      _
    // Predicated region
    $region34: #{tpu_custom_call.1} parent=1 // pred_check
      _
    $region35: #{tpu_custom_call.1} parent=1 // pred_check_branch
      %238 = sbr.rel (0) target = $region37
    $region36: #{tpu_custom_call.1} parent=1 // pred_region
      %s240 = ssub.s32 128, 128
      %241 = vsyncadd [#allocation4], %s240
      %s243 = sshll.u32 [#allocation5], 4
      %s244 = int_to_ptr.vmem [resolvable:$true] %s243
      %246 = dma.vmem_to_hbm [thread:$0]  %s244, 128, %s4, [#allocation4]
    $region37: #{tpu_custom_call.1} parent=1 // pred_fallthru
      _
    // Predicated region
    $region38: #{tpu_custom_call.1} parent=1 // pred_check
      _
    $region39: #{tpu_custom_call.1} parent=1 // pred_check_branch
      %248 = sbr.rel (0) target = $region41
    $region40: #{tpu_custom_call.1} parent=1 // pred_region
      %249 = dma.done [#allocation4], 128
    $region41: #{tpu_custom_call.1} parent=1 // pred_fallthru
      _
    %250 = vsyncpa [#allocation3], 1
    %251 = vsyncpa [#allocation4], 1

</llo_original>
